<compile_context>
chip_gen: v7x
topology: tpu7x:2x2x1
jax: 0.10.0
libtpu: 0.0.40
codegen_flags: <defaults>
</compile_context>

<pallas_src>
import numpy as np
import jax
import jax.numpy as jnp
from jax.experimental import pallas as pl
from jax.experimental.pallas import tpu as pltpu

EPS = 0.01
SSIM_WINDOW = 11
SSIM_SIGMA = 1.5


def _round_up(x, m):
    return -(-x // m) * m


# ---------------------------------------------------------------------------
# 1) elementwise metric maps (l1, l2, mrse, mape, smape)
# ---------------------------------------------------------------------------
def _elementwise_kernel(pred_ref, gt_ref, l1_ref, l2_ref, mrse_ref, mape_ref,
                        smape_ref):
    pred = pred_ref[...]
    gt = gt_ref[...]
    diff = gt - pred
    ad = jnp.abs(diff)
    l1_ref[...] = ad
    l2_ref[...] = diff * diff
    # NOTE: signed denominators (gt + eps, gt + pred + eps) exactly match the
    # PyTorch reference; do not switch to abs().
    mrse_ref[...] = diff * diff / (gt * gt + EPS)
    mape_ref[...] = ad / (gt + EPS)
    smape_ref[...] = 2.0 * ad / (gt + pred + EPS)


def elementwise_metrics(pred, gt):
    shape = pred.shape
    n = int(np.prod(shape))

    # Lane-dense layout picked so that no padding copy is needed whenever n
    # divides a 128-multiple lane width (true for typical frame sizes): this
    # kernel is pure HBM roofline, so the old pad-2-inputs / slice-5-outputs
    # round trip roughly doubled the traffic.
    lane = None
    for cand in (1024, 512, 256, 128):
        if n % cand == 0:
            lane = cand
            rows = n // cand
            pad_elems = 0
            break
    if lane is None:
        lane = 128
        rows = _round_up(-(-n // lane), 8)
        pad_elems = rows * lane - n

    if rows % 8 == 0:
        tm = 8
        for cand in (512, 384, 256, 192, 128, 96, 64, 48, 32, 24, 16, 8):
            if cand <= rows and rows % cand == 0:
                tm = cand
                break
        # v7x megacore: prefer >= 2 grid steps so 'parallel' uses both cores.
        if rows // tm < 2 and rows % 16 == 0:
            tm = rows // 2
    else:
        tm = rows                      # full-dim block (rows not a mult of 8)
    grid = rows // tm

    def prep(a):
        a = a.reshape(-1)
        if pad_elems:
            a = jnp.pad(a, (0, pad_elems))
        return a.reshape(rows, lane)

    spec = pl.BlockSpec((tm, lane), lambda i: (i, 0))
    out_shape = tuple(jax.ShapeDtypeStruct((rows, lane), jnp.float32)
                      for _ in range(5))
    outs = pl.pallas_call(
        _elementwise_kernel,
        out_shape=out_shape,
        grid_spec=pltpu.PrefetchScalarGridSpec(
            num_scalar_prefetch=0,
            grid=(grid,),
            in_specs=[spec, spec],
            out_specs=tuple([spec] * 5),
        ),
        compiler_params=pltpu.CompilerParams(
            dimension_semantics=("parallel",),
            vmem_limit_bytes=48 * 1024 * 1024),
    )(prep(pred), prep(gt))
    if pad_elems:
        return tuple(o.reshape(-1)[:n].reshape(shape) for o in outs)
    return tuple(o.reshape(shape) for o in outs)


# ---------------------------------------------------------------------------
# 2) DSSIM = 1 - mean(ssim_map)   (pytorch_ssim semantics with NHWC quirk)
# ---------------------------------------------------------------------------
def _gaussian_1d(ws, sigma):
    xs = np.arange(ws, dtype=np.float64)
    g = np.exp(-((xs - ws // 2) ** 2) / (2.0 * sigma ** 2))
    return (g / g.sum()).astype(np.float32)


def _band_matrix(n, g):
    # out[i] = sum_k g[k] * x[i + k - pad]  (zero padded), as a dense matrix
    ws = len(g)
    pad = ws // 2
    a = np.zeros((n, n), np.float32)
    for i in range(n):
        for k in range(ws):
            p = i + k - pad
            if 0 <= p < n:
                a[i, p] += g[k]
    return a


def _make_ssim_kernel(C, W, S, cmix):
    """One grid step: S slices of shape (W, C); lanes carry the slice batch."""
    c1 = 0.01 ** 2
    c2 = 0.03 ** 2

    def kernel(x_ref, y_ref, band_ref, out_ref):
        band = band_ref[...]                 # (W, W) gaussian band matrix

        def blur(plane):                     # W-direction blur on the MXU
            # f32 operands, f32 accumulate (raise precision if ever needed).
            return jnp.dot(band, plane, preferred_element_type=jnp.float32)

        xs = [x_ref[c] for c in range(C)]    # C planes of (W, S)
        ys = [y_ref[c] for c in range(C)]

        acc = jnp.zeros((1, S), jnp.float32)
        # One output channel at a time: ~11 live (W, S) planes instead of ~21,
        # which is what lets S grow without spilling (squares/products are
        # recomputed inside each channel mix, which is cheap VPU work).
        for c in range(C):
            def cmix_sum(ps, _c=c):          # C-direction gaussian (C < 11)
                m = cmix[_c][0] * ps[0]
                for j in range(1, C):
                    m = m + cmix[_c][j] * ps[j]
                return m

            mu1 = blur(cmix_sum(xs))
            mu2 = blur(cmix_sum(ys))
            e11 = blur(cmix_sum([a * a for a in xs]))
            e22 = blur(cmix_sum([a * a for a in ys]))
            e12 = blur(cmix_sum([a * b for a, b in zip(xs, ys)]))

            m1s, m2s, m12 = mu1 * mu1, mu2 * mu2, mu1 * mu2
            s1 = e11 - m1s
            s2 = e22 - m2s
            s12 = e12 - m12
            num = (2.0 * m12 + c1) * (2.0 * s12 + c2)
            den = (m1s + m2s + c1) * (s1 + s2 + c2)
            smap = num * pl.reciprocal(den, approx=True)     # EUP slot
            acc = acc + jnp.sum(smap, axis=0, keepdims=True)  # (1, S)
        out_ref[0] = acc                                      # per-slice sums

    return kernel


def dssim(pred, gt):
    # pytorch_ssim assumes NCHW; the module feeds raw NHWC, so "channels" = H
    # and the blurred spatial plane is (W, C).  Reproduced exactly.
    B, H, W, C = pred.shape
    n_slices = B * H
    S = 256                               # slices per grid step (lane axis)
    while S > 128 and _round_up(n_slices, S) // S < 2:
        S //= 2                           # keep >= 2 grid steps when possible
    npad = _round_up(n_slices, S)
    grid = npad // S

    def prep(a):
        a = a.reshape(n_slices, W, C)
        a = jnp.transpose(a, (2, 1, 0))           # (C, W, n_slices)
        return jnp.pad(a, ((0, 0), (0, 0), (0, npad - n_slices)))

    g = _gaussian_1d(SSIM_WINDOW, SSIM_SIGMA)
    band = jnp.asarray(_band_matrix(W, g))        # W-direction blur matrix
    cmix = tuple(tuple(float(v) for v in row)     # C-direction blur (dense)
                 for row in _band_matrix(C, g))

    out = pl.pallas_call(
        _make_ssim_kernel(C, W, S, cmix),
        out_shape=jax.ShapeDtypeStruct((grid, 1, S), jnp.float32),
        grid_spec=pltpu.PrefetchScalarGridSpec(
            num_scalar_prefetch=0,
            grid=(grid,),
            in_specs=[pl.BlockSpec((C, W, S), lambda n: (0, 0, n)),
                      pl.BlockSpec((C, W, S), lambda n: (0, 0, n)),
                      pl.BlockSpec((W, W), lambda n: (0, 0))],
            out_specs=pl.BlockSpec((1, 1, S), lambda n: (n, 0, 0)),
        ),
        compiler_params=pltpu.CompilerParams(
            dimension_semantics=("parallel",),
            vmem_limit_bytes=48 * 1024 * 1024),
    )(prep(pred), prep(gt), band)

    per_slice = out.reshape(grid * S)[:n_slices]   # drop padded slices
    mssim = jnp.sum(per_slice) / float(n_slices * W * C)
    return 1.0 - mssim


# ---------------------------------------------------------------------------
# 3) LPIPS (synthetic stand-in backbone), fully fused per image
# ---------------------------------------------------------------------------
def _lpips_masks(Hs, Ws, Wpd):
    """Vectorized content / stride-2 masks (no Python per-pixel loops)."""
    H1, W1 = (Hs + 1) // 2, (Ws + 1) // 2
    cols = np.arange(Wpd)[None, :]
    content_c = (cols >= 1) & (cols <= Ws)
    rows_full = np.arange(Hs + 2)[:, None]
    m_in = (rows_full >= 1) & (rows_full <= Hs) & content_c
    rows_int = np.arange(1, Hs + 1)[:, None]
    m1 = ((rows_int % 2 == 1) & (cols % 2 == 1)
          & (rows_int <= 2 * H1 - 1) & (cols <= 2 * W1 - 1) & content_c)
    return (m_in.astype(np.float32).reshape(1, (Hs + 2) * Wpd),
            m1.astype(np.float32).reshape(1, Hs * Wpd))


def _make_lpips_kernel(C, C0, C1, Hs, Ws, Wpd):
    Lp = (Hs + 2) * Wpd          # zero-padded image, flattened (row pitch Wpd)
    Li = Hs * Wpd                # interior row band = conv output positions
    H1, W1 = (Hs + 1) // 2, (Ws + 1) // 2

    def tap(src, di, dj):
        # 3x3 tap (di, dj): lane-aligned row-shift slice (offset di*Wpd, Wpd is
        # a multiple of 128) plus a +/-1 lane roll; roll wrap-around only ever
        # lands on masked border columns.
        a = src[:, di * Wpd: di * Wpd + Li]
        if dj == 1:
            return a
        return pltpu.roll(a, (1 - dj) % Li, axis=1)

    def conv3x3_relu(src, w_ref):
        acc = None
        for t in range(9):
            di, dj = divmod(t, 3)
            contrib = jnp.dot(w_ref[t], tap(src, di, dj),
                              preferred_element_type=jnp.float32)
            acc = contrib if acc is None else acc + contrib
        # TODO(synk): folding the 9 taps into the MXU K dimension (or driving
        # matmul_push_rhs/acc_lhs) would remove the 8 VPU adds per conv at the
        # cost of a stacked (9*Cin, Li) operand; skipped to bound VMEM.
        return jnp.maximum(acc, 0.0)

    def kernel(x_ref, y_ref, w0_ref, w1_ref, lin0_ref, lin1_ref,
               shift_ref, iscale_ref, min_ref, m1_ref, out_ref, fbuf, gbuf):
        m_in = min_ref[...]                     # (1, Lp) content mask
        m0i = m_in[:, Wpd: Wpd + Li]            # (1, Li) interior-band content
        m1i = m1_ref[...]                       # (1, Li) stride-2 positions

        def branch(img_ref, buf):
            # fused input normalization; mask re-zeroes the conv zero padding
            xm = (img_ref[0] - shift_ref[...]) * iscale_ref[...] * m_in
            f0 = conv3x3_relu(xm, w0_ref) * m0i                   # (C0, Li)
            # zero only the one-row halos; the interior is overwritten below
            # (do NOT guard this with program_id==0: under megacore 'parallel'
            # core 1 never executes grid step 0).
            buf[:, 0:Wpd] = jnp.zeros((C0, Wpd), jnp.float32)
            buf[:, Wpd + Li: Lp] = jnp.zeros((C0, Wpd), jnp.float32)
            buf[:, Wpd: Wpd + Li] = f0           # conv0 features stay in VMEM
            # TODO(synk): conv1 is still evaluated densely over the band and
            # masked to the stride-2 grid; restricting it to its H1 x W1
            # outputs needs a row/col parity-split layout (planned follow-up).
            f1 = conv3x3_relu(buf, w1_ref) * m1i                  # (C1, Li)
            return f1

        f1 = branch(x_ref, fbuf)
        g1 = branch(y_ref, gbuf)

        def layer_dist(fa, fb, lin_ref, denom):
            na = fa * jax.lax.rsqrt(
                jnp.sum(fa * fa, axis=0, keepdims=True) + 1e-10)
            nb = fb * jax.lax.rsqrt(
                jnp.sum(fb * fb, axis=0, keepdims=True) + 1e-10)
            return jnp.sum((na - nb) * (na - nb) * lin_ref[...]) / denom

        # layer-0 features are re-read from the scratch interiors instead of
        # keeping duplicate live copies of f0/g0 alongside the buffers.
        d0 = layer_dist(fbuf[:, Wpd: Wpd + Li], gbuf[:, Wpd: Wpd + Li],
                        lin0_ref, float(Hs * Ws))
        d1 = layer_dist(f1, g1, lin1_ref, float(H1 * W1))
        out_ref[0, 0, 0] = d0 + d1

    return kernel


def init_lpips_params():
    # TODO(synk): the reference uses a pretrained LPIPS (AlexNet/VGG) network;
    # a small deterministic 2-layer synthetic backbone stands in for it (same
    # metric structure: input scaling -> 3x3 convs + relu (stride 1, 2) ->
    # unit-normalize -> squared diff -> per-channel lin weights -> spatial
    # mean -> sum over layers -> (N, 1, 1, 1)).
    k0, k1, k2, k3 = jax.random.split(jax.random.PRNGKey(1234), 4)
    C, C0, C1 = 3, 8, 16
    return dict(
        shift=jnp.array([-0.030, -0.088, -0.188], jnp.float32).reshape(C, 1),
        inv_scale=(1.0 / jnp.array([0.458, 0.448, 0.450],
                                   jnp.float32)).reshape(C, 1),
        conv0_w=jax.random.normal(k0, (9, C0, C), jnp.float32) * 0.2,
        conv1_w=jax.random.normal(k1, (9, C1, C0), jnp.float32) * 0.1,
        lin0=jnp.abs(jax.random.normal(k2, (C0, 1), jnp.float32)) * 0.1,
        lin1=jnp.abs(jax.random.normal(k3, (C1, 1), jnp.float32)) * 0.1,
    )


def _const_spec(shape):
    zeros = (0,) * len(shape)
    return pl.BlockSpec(tuple(shape), lambda b, _z=zeros: _z)


def lpips(pred, gt, params):
    # PyTorch feeds pred.permute(0, 3, 2, 1): NHWC -> (N, C, W, H), i.e. the
    # backbone's spatial dims are (W, H).
    B, H, W, C = pred.shape
    Hs, Ws = W, H
    Wpd = _round_up(Ws + 2, 128)       # lane-aligned row pitch: every +/-row
    Lp = (Hs + 2) * Wpd                # tap slice starts on a 128-lane tile
    Li = Hs * Wpd
    C0 = params["conv0_w"].shape[1]
    C1 = params["conv1_w"].shape[1]
    m_in, m1 = _lpips_masks(Hs, Ws, Wpd)

    def prep(a):
        a = jnp.transpose(a, (0, 3, 2, 1))                    # (B, C, Hs, Ws)
        a = jnp.pad(a, ((0, 0), (0, 0), (1, 1),
                        (1, Wpd - Ws - 1)))   # conv zero pad + lane-pad pitch
        return a.reshape(B, C, Lp)

    img_spec = pl.BlockSpec((1, C, Lp), lambda b: (b, 0, 0))
    out = pl.pallas_call(
        _make_lpips_kernel(C, C0, C1, Hs, Ws, Wpd),
        out_shape=jax.ShapeDtypeStruct((B, 1, 1), jnp.float32),
        grid_spec=pltpu.PrefetchScalarGridSpec(
            num_scalar_prefetch=0,
            grid=(B,),
            in_specs=[
                img_spec, img_spec,
                _const_spec((9, C0, C)), _const_spec((9, C1, C0)),
                _const_spec((C0, 1)), _const_spec((C1, 1)),
                _const_spec((C, 1)), _const_spec((C, 1)),
                _const_spec((1, Lp)), _const_spec((1, Li)),
            ],
            out_specs=pl.BlockSpec((1, 1, 1), lambda b: (b, 0, 0)),
            scratch_shapes=[pltpu.VMEM((C0, Lp), jnp.float32),
                            pltpu.VMEM((C0, Lp), jnp.float32)],
        ),
        compiler_params=pltpu.CompilerParams(
            dimension_semantics=("parallel",),
            vmem_limit_bytes=48 * 1024 * 1024),
    )(prep(pred), prep(gt),
      params["conv0_w"], params["conv1_w"],
      params["lin0"], params["lin1"],
      params["shift"], params["inv_scale"],
      jnp.asarray(m_in), jnp.asarray(m1))
    # TODO(synk): at real frame sizes (e.g. 512x512) this per-image fusion
    # exceeds v7x's 64 MiB VMEM; row-band tiling (grid over (B, band) with a
    # one-row halo carried between bands) is needed there and also gives the
    # megacore a parallel axis when B == 1.
    return out.reshape(B, 1, 1, 1)


# ---------------------------------------------------------------------------
class AllMetrics:
    _KEYS = ("l1", "l2", "lpips", "dssim", "mape", "smape", "mrse")

    def __init__(self):
        self.metrics = {k: 0 for k in self._KEYS}
        self.lpips_params = init_lpips_params()
        self.loss_map = jnp.zeros([0])

    def reset(self):
        for k in self._KEYS:
            self.metrics[k] = 0

    def forward(self, pred, gt):
        l1, l2, mrse, mape, smape = elementwise_metrics(pred, gt)
        self.metrics["l1"] = l1
        self.metrics["l2"] = l2
        self.metrics["mrse"] = mrse
        self.metrics["mape"] = mape
        self.metrics["smape"] = smape
        self.metrics["dssim"] = dssim(pred, gt)
        self.metrics["lpips"] = lpips(pred, gt, self.lpips_params)
        return self


if __name__ == "__main__":
    key = jax.random.PRNGKey(0)
    kp, kg = jax.random.split(key)
    B, H, W, C = 2, 16, 16, 3
    pred = jax.random.uniform(kp, (B, H, W, C), jnp.float32)
    gt = jax.random.uniform(kg, (B, H, W, C), jnp.float32)

    m = AllMetrics().forward(pred, gt)
    jax.block_until_ready(jax.tree_util.tree_leaves(m.metrics))
    print("KERNEL_OK")
</pallas_src>

<mosaic_0001>
module attributes {stable_mosaic.version = 11 : i64} {
  func.func @_elementwise_kernel(%arg0: i32, %arg1: memref<3x512xf32, #tpu.memory_space<vmem>>, %arg2: memref<3x512xf32, #tpu.memory_space<vmem>>, %arg3: memref<3x512xf32, #tpu.memory_space<vmem>>, %arg4: memref<3x512xf32, #tpu.memory_space<vmem>>, %arg5: memref<3x512xf32, #tpu.memory_space<vmem>>, %arg6: memref<3x512xf32, #tpu.memory_space<vmem>>, %arg7: memref<3x512xf32, #tpu.memory_space<vmem>>) attributes {dimension_semantics = [#tpu.dimension_semantics<parallel>], iteration_bounds = array<i64: 1>, scalar_prefetch = 0 : i64, scratch_operands = 0 : i64, tpu.core_type = #tpu.core_type<tc>, window_params = [{transform_indices = @transform_0, window_bounds = array<i64: 3, 512>}, {transform_indices = @transform_1, window_bounds = array<i64: 3, 512>}, {transform_indices = @transform_2, window_bounds = array<i64: 3, 512>}, {transform_indices = @transform_3, window_bounds = array<i64: 3, 512>}, {transform_indices = @transform_4, window_bounds = array<i64: 3, 512>}, {transform_indices = @transform_5, window_bounds = array<i64: 3, 512>}, {transform_indices = @transform_6, window_bounds = array<i64: 3, 512>}]} {
    %c0 = arith.constant 0 : index
    %c0_0 = arith.constant 0 : index
    %0 = vector.load %arg1[%c0, %c0_0] : memref<3x512xf32, #tpu.memory_space<vmem>>, vector<3x512xf32>
    %c0_1 = arith.constant 0 : index
    %c0_2 = arith.constant 0 : index
    %1 = vector.load %arg2[%c0_1, %c0_2] : memref<3x512xf32, #tpu.memory_space<vmem>>, vector<3x512xf32>
    %2 = arith.subf %1, %0 : vector<3x512xf32>
    %3 = math.absf %2 : vector<3x512xf32>
    %c0_3 = arith.constant 0 : index
    %c0_4 = arith.constant 0 : index
    %4 = vector.load %arg3[%c0_3, %c0_4] : memref<3x512xf32, #tpu.memory_space<vmem>>, vector<3x512xf32>
    tpu.vector_store %arg3[%c0_3, %c0_4], %3 {strides = array<i32>} : memref<3x512xf32, #tpu.memory_space<vmem>>, vector<3x512xf32>,
    %5 = arith.mulf %2, %2 : vector<3x512xf32>
    %c0_5 = arith.constant 0 : index
    %c0_6 = arith.constant 0 : index
    %6 = vector.load %arg4[%c0_5, %c0_6] : memref<3x512xf32, #tpu.memory_space<vmem>>, vector<3x512xf32>
    tpu.vector_store %arg4[%c0_5, %c0_6], %5 {strides = array<i32>} : memref<3x512xf32, #tpu.memory_space<vmem>>, vector<3x512xf32>,
    %7 = arith.mulf %2, %2 : vector<3x512xf32>
    %8 = arith.mulf %1, %1 : vector<3x512xf32>
    %cst = arith.constant 0.00999999977 : f32
    %9 = vector.broadcast %cst : f32 to vector<3x512xf32>
    %10 = arith.addf %8, %9 : vector<3x512xf32>
    %11 = arith.divf %7, %10 : vector<3x512xf32>
    %c0_7 = arith.constant 0 : index
    %c0_8 = arith.constant 0 : index
    %12 = vector.load %arg5[%c0_7, %c0_8] : memref<3x512xf32, #tpu.memory_space<vmem>>, vector<3x512xf32>
    tpu.vector_store %arg5[%c0_7, %c0_8], %11 {strides = array<i32>} : memref<3x512xf32, #tpu.memory_space<vmem>>, vector<3x512xf32>,
    %cst_9 = arith.constant 0.00999999977 : f32
    %13 = vector.broadcast %cst_9 : f32 to vector<3x512xf32>
    %14 = arith.addf %1, %13 : vector<3x512xf32>
    %15 = arith.divf %3, %14 : vector<3x512xf32>
    %c0_10 = arith.constant 0 : index
    %c0_11 = arith.constant 0 : index
    %16 = vector.load %arg6[%c0_10, %c0_11] : memref<3x512xf32, #tpu.memory_space<vmem>>, vector<3x512xf32>
    tpu.vector_store %arg6[%c0_10, %c0_11], %15 {strides = array<i32>} : memref<3x512xf32, #tpu.memory_space<vmem>>, vector<3x512xf32>,
    %cst_12 = arith.constant 2.000000e+00 : f32
    %17 = vector.broadcast %cst_12 : f32 to vector<3x512xf32>
    %18 = arith.mulf %17, %3 : vector<3x512xf32>
    %19 = arith.addf %1, %0 : vector<3x512xf32>
    %cst_13 = arith.constant 0.00999999977 : f32
    %20 = vector.broadcast %cst_13 : f32 to vector<3x512xf32>
    %21 = arith.addf %19, %20 : vector<3x512xf32>
    %22 = arith.divf %18, %21 : vector<3x512xf32>
    %c0_14 = arith.constant 0 : index
    %c0_15 = arith.constant 0 : index
    %23 = vector.load %arg7[%c0_14, %c0_15] : memref<3x512xf32, #tpu.memory_space<vmem>>, vector<3x512xf32>
    tpu.vector_store %arg7[%c0_14, %c0_15], %22 {strides = array<i32>} : memref<3x512xf32, #tpu.memory_space<vmem>>, vector<3x512xf32>,
    return
  }
  func.func @transform_0(%arg0: i32) -> (i32, i32) {
    %c0_i32 = arith.constant 0 : i32
    %c0_i32_0 = arith.constant 0 : i32
    return %arg0, %c0_i32 : i32, i32
  }
  func.func @transform_1(%arg0: i32) -> (i32, i32) {
    %c0_i32 = arith.constant 0 : i32
    %c0_i32_0 = arith.constant 0 : i32
    return %arg0, %c0_i32 : i32, i32
  }
  func.func @transform_2(%arg0: i32) -> (i32, i32) {
    %c0_i32 = arith.constant 0 : i32
    %c0_i32_0 = arith.constant 0 : i32
    return %arg0, %c0_i32 : i32, i32
  }
  func.func @transform_3(%arg0: i32) -> (i32, i32) {
    %c0_i32 = arith.constant 0 : i32
    %c0_i32_0 = arith.constant 0 : i32
    return %arg0, %c0_i32 : i32, i32
  }
  func.func @transform_4(%arg0: i32) -> (i32, i32) {
    %c0_i32 = arith.constant 0 : i32
    %c0_i32_0 = arith.constant 0 : i32
    return %arg0, %c0_i32 : i32, i32
  }
  func.func @transform_5(%arg0: i32) -> (i32, i32) {
    %c0_i32 = arith.constant 0 : i32
    %c0_i32_0 = arith.constant 0 : i32
    return %arg0, %c0_i32 : i32, i32
  }
  func.func @transform_6(%arg0: i32) -> (i32, i32) {
    %c0_i32 = arith.constant 0 : i32
    %c0_i32_0 = arith.constant 0 : i32
    return %arg0, %c0_i32 : i32, i32
  }
}

</mosaic_0001>

<llo_original>
// kernel: tpu_custom_call.1
$region0: #{tpu_custom_call.1}
  #allocation0 [shape = 'u32[]', space=smem, size = 0x4, offset = 0x4, fixed_abs, tag = 'smem constant byte address 0x4 - core index']
  #allocation1 [shape = 'u32[144,128]{1,0:T(1,128)}', space=vmem, size = 0x12000, scoped, tag = 'internal scratch']
  %s0 = inlined_call_operand.hbm [shape: f32[3,512], index: 0, kind: input, shape index: {}]
  %s1 = inlined_call_operand.hbm [shape: f32[3,512], index: 1, kind: input, shape index: {}]
  %s2 = inlined_call_operand.hbm [shape: f32[3,512], index: 2, kind: output, shape index: {0}]
  %s3 = inlined_call_operand.hbm [shape: f32[3,512], index: 3, kind: output, shape index: {1}]
  %s4 = inlined_call_operand.hbm [shape: f32[3,512], index: 4, kind: output, shape index: {2}]
  %s5 = inlined_call_operand.hbm [shape: f32[3,512], index: 5, kind: output, shape index: {3}]
  %s6 = inlined_call_operand.hbm [shape: f32[3,512], index: 6, kind: output, shape index: {4}]
  %7 = xla_tuple %s2, %s3, %s4, %s5, %s6
  %s8 = sld [smem:[#allocation0]]
  $region58: #{tpu_custom_call.1} parent=0
    _
  %s10 = ssub.s32 1, %s8
  %s11 = scalar_select 0, %s10, %s8
  $region1: #{tpu_custom_call.1} parent=0
    #allocation2 [shape = 'u8[8192]{0}', space=vmem, size = 0x2000, scoped, tag = 'input window, operand 0, single buffered']
    #allocation3 [shape = 's32[1]{0}', space=sflag, size = 0x4, scoped, tag = 'scoped memory for tpu_custom_call.1']
    #allocation4 [shape = 's32[1]{0}', space=sflag, size = 0x4, scoped, tag = 'scoped memory for tpu_custom_call.1']
    #allocation5 [shape = 'u8[8192]{0}', space=vmem, size = 0x2000, scoped, tag = 'input window, operand 1, single buffered']
    #allocation6 [shape = 's32[1]{0}', space=sflag, size = 0x4, scoped, tag = 'scoped memory for tpu_custom_call.1']
    #allocation7 [shape = 'u8[8192]{0}', space=vmem, size = 0x2000, scoped, tag = 'output window, operand 0, single buffered']
    #allocation8 [shape = 'u8[8192]{0}', space=vmem, size = 0x2000, scoped, tag = 'output window, operand 1, single buffered']
    #allocation9 [shape = 's32[1]{0}', space=sflag, size = 0x4, scoped, tag = 'scoped memory for tpu_custom_call.1']
    #allocation10 [shape = 'u8[8192]{0}', space=vmem, size = 0x2000, scoped, tag = 'output window, operand 2, single buffered']
    #allocation11 [shape = 'u8[8192]{0}', space=vmem, size = 0x2000, scoped, tag = 'output window, operand 3, single buffered']
    #allocation12 [shape = 's32[1]{0}', space=sflag, size = 0x4, scoped, tag = 'scoped memory for tpu_custom_call.1']
    #allocation13 [shape = 'u8[8192]{0}', space=vmem, size = 0x2000, scoped, tag = 'output window, operand 4, single buffered']
    %12 = vsyncpa [#allocation3], 0
    %13 = vsyncpa [#allocation6], 0
    %14 = vsyncpa [#allocation4], 0
    %15 = vsyncpa [#allocation9], 0
    %16 = vsyncpa [#allocation12], 0
    // Predicated region
    $region2: #{tpu_custom_call.1} parent=1 // pred_check
      _
    $region3: #{tpu_custom_call.1} parent=1 // pred_check_branch
      %18 = sbr.rel (0) target = $region5
    $region4: #{tpu_custom_call.1} parent=1 // pred_region
      %s20 = ssub.s32 256, 256
      %21 = vsyncadd [#allocation3], %s20
      %s23 = sshll.u32 [#allocation2], 4
      %s24 = int_to_ptr.vmem [resolvable:$true] %s23
      %26 = dma.hbm_to_vmem [thread:$0]  %s0, 256, %s24, [#allocation3]
    $region5: #{tpu_custom_call.1} parent=1 // pred_fallthru
      _
    // Predicated region
    $region6: #{tpu_custom_call.1} parent=1 // pred_check
      _
    $region7: #{tpu_custom_call.1} parent=1 // pred_check_branch
      %28 = sbr.rel (0) target = $region9
    $region8: #{tpu_custom_call.1} parent=1 // pred_region
      %s30 = ssub.s32 256, 256
      %31 = vsyncadd [#allocation6], %s30
      %s33 = sshll.u32 [#allocation5], 4
      %s34 = int_to_ptr.vmem [resolvable:$true] %s33
      %36 = dma.hbm_to_vmem [thread:$0]  %s1, 256, %s34, [#allocation6]
    $region9: #{tpu_custom_call.1} parent=1 // pred_fallthru
      _
    // Predicated region
    $region10: #{tpu_custom_call.1} parent=1 // pred_check
      _
    $region11: #{tpu_custom_call.1} parent=1 // pred_check_branch
      %38 = sbr.rel (0) target = $region13
    $region12: #{tpu_custom_call.1} parent=1 // pred_region
      %39 = dma.done [#allocation3], 256
    $region13: #{tpu_custom_call.1} parent=1 // pred_fallthru
      _
    // Predicated region
    $region14: #{tpu_custom_call.1} parent=1 // pred_check
      _
    $region15: #{tpu_custom_call.1} parent=1 // pred_check_branch
      %41 = sbr.rel (0) target = $region17
    $region16: #{tpu_custom_call.1} parent=1 // pred_region
      %42 = dma.done [#allocation6], 256
    $region17: #{tpu_custom_call.1} parent=1 // pred_fallthru
      _
    %v43 = vld [vmem:[#allocation2] sm:$0x77]
    %v44 = vld [vmem:[#allocation2 + $0x8] sm:$0x77]
    %v45 = vld [vmem:[#allocation5] sm:$0x77]
    %v46 = vld [vmem:[#allocation5 + $0x8] sm:$0x77]
    %v47 = vsub.f32 %v45, %v43
    %v48 = vsub.f32 %v46, %v44
    %v49 = vand.u32 2147483647, %v47
    %v50 = vand.u32 2147483647, %v48
    %51 = vst [vmem:[#allocation7] sm:$0x77] %v49
    %52 = vst [vmem:[#allocation7 + $0x8] sm:$0x77] %v50
    %v53 = vmul.f32 %v47, %v47
    %v54 = vmul.f32 %v48, %v48
    %55 = vst [vmem:[#allocation8] sm:$0x77] %v53
    %56 = vst [vmem:[#allocation8 + $0x8] sm:$0x77] %v54
    %v57 = vmul.f32 %v45, %v45
    %v58 = vmul.f32 %v46, %v46
    %v59 = vadd.f32 %v57, 0.01
    %v60 = vadd.f32 %v58, 0.01
    %v61 = vrcp.pop %v59
    %v62 = vmul.f32 %v53, %v61
    %v63 = vrcp.pop %v60
    %v64 = vmul.f32 %v54, %v63
    %65 = vst [vmem:[#allocation10] sm:$0x77] %v62
    %66 = vst [vmem:[#allocation10 + $0x8] sm:$0x77] %v64
    %v67 = vadd.f32 %v45, 0.01
    %v68 = vadd.f32 %v46, 0.01
    %v69 = vrcp.pop %v67
    %v70 = vmul.f32 %v49, %v69
    %v71 = vrcp.pop %v68
    %v72 = vmul.f32 %v50, %v71
    %73 = vst [vmem:[#allocation11] sm:$0x77] %v70
    %74 = vst [vmem:[#allocation11 + $0x8] sm:$0x77] %v72
    %v75 = vmul.f32 %v49, 2.0
    %v76 = vmul.f32 %v50, 2.0
    %v77 = vadd.f32 %v45, %v43
    %v78 = vadd.f32 %v46, %v44
    %v79 = vadd.f32 %v77, 0.01
    %v80 = vadd.f32 %v78, 0.01
    %v81 = vrcp.pop %v79
    %v82 = vmul.f32 %v75, %v81
    %v83 = vrcp.pop %v80
    %v84 = vmul.f32 %v76, %v83
    %85 = vst [vmem:[#allocation13] sm:$0x77] %v82
    %86 = vst [vmem:[#allocation13 + $0x8] sm:$0x77] %v84
    // Predicated region
    $region18: #{tpu_custom_call.1} parent=1 // pred_check
      _
    $region19: #{tpu_custom_call.1} parent=1 // pred_check_branch
      %88 = sbr.rel (0) target = $region21
    $region20: #{tpu_custom_call.1} parent=1 // pred_region
      %s90 = ssub.s32 256, 256
      %91 = vsyncadd [#allocation4], %s90
      %s93 = sshll.u32 [#allocation7], 4
      %s94 = int_to_ptr.vmem [resolvable:$true] %s93
      %96 = dma.vmem_to_hbm [thread:$0]  %s94, 256, %s2, [#allocation4]
    $region21: #{tpu_custom_call.1} parent=1 // pred_fallthru
      _
    // Predicated region
    $region22: #{tpu_custom_call.1} parent=1 // pred_check
      _
    $region23: #{tpu_custom_call.1} parent=1 // pred_check_branch
      %98 = sbr.rel (0) target = $region25
    $region24: #{tpu_custom_call.1} parent=1 // pred_region
      %s100 = ssub.s32 256, 256
      %101 = vsyncadd [#allocation9], %s100
      %s103 = sshll.u32 [#allocation8], 4
      %s104 = int_to_ptr.vmem [resolvable:$true] %s103
      %106 = dma.vmem_to_hbm [thread:$0]  %s104, 256, %s3, [#allocation9]
    $region25: #{tpu_custom_call.1} parent=1 // pred_fallthru
      _
    // Predicated region
    $region26: #{tpu_custom_call.1} parent=1 // pred_check
      _
    $region27: #{tpu_custom_call.1} parent=1 // pred_check_branch
      %108 = sbr.rel (0) target = $region29
    $region28: #{tpu_custom_call.1} parent=1 // pred_region
      %s110 = ssub.s32 256, 256
      %111 = vsyncadd [#allocation9], %s110
      %s113 = sshll.u32 [#allocation10], 4
      %s114 = int_to_ptr.vmem [resolvable:$true] %s113
      %116 = dma.vmem_to_hbm [thread:$0]  %s114, 256, %s4, [#allocation9]
    $region29: #{tpu_custom_call.1} parent=1 // pred_fallthru
      _
    // Predicated region
    $region30: #{tpu_custom_call.1} parent=1 // pred_check
      _
    $region31: #{tpu_custom_call.1} parent=1 // pred_check_branch
      %118 = sbr.rel (0) target = $region33
    $region32: #{tpu_custom_call.1} parent=1 // pred_region
      %s120 = ssub.s32 256, 256
      %121 = vsyncadd [#allocation12], %s120
      %s123 = sshll.u32 [#allocation11], 4
      %s124 = int_to_ptr.vmem [resolvable:$true] %s123
      %126 = dma.vmem_to_hbm [thread:$0]  %s124, 256, %s5, [#allocation12]
    $region33: #{tpu_custom_call.1} parent=1 // pred_fallthru
      _
    // Predicated region
    $region34: #{tpu_custom_call.1} parent=1 // pred_check
      _
    $region35: #{tpu_custom_call.1} parent=1 // pred_check_branch
      %128 = sbr.rel (0) target = $region37
    $region36: #{tpu_custom_call.1} parent=1 // pred_region
      %s130 = ssub.s32 256, 256
      %131 = vsyncadd [#allocation12], %s130
      %s133 = sshll.u32 [#allocation13], 4
      %s134 = int_to_ptr.vmem [resolvable:$true] %s133
      %136 = dma.vmem_to_hbm [thread:$0]  %s134, 256, %s6, [#allocation12]
    $region37: #{tpu_custom_call.1} parent=1 // pred_fallthru
      _
    // Predicated region
    $region38: #{tpu_custom_call.1} parent=1 // pred_check
      _
    $region39: #{tpu_custom_call.1} parent=1 // pred_check_branch
      %138 = sbr.rel (0) target = $region41
    $region40: #{tpu_custom_call.1} parent=1 // pred_region
      %139 = dma.done [#allocation4], 256
    $region41: #{tpu_custom_call.1} parent=1 // pred_fallthru
      _
    // Predicated region
    $region42: #{tpu_custom_call.1} parent=1 // pred_check
      _
    $region43: #{tpu_custom_call.1} parent=1 // pred_check_branch
      %141 = sbr.rel (0) target = $region45
    $region44: #{tpu_custom_call.1} parent=1 // pred_region
      %142 = dma.done [#allocation9], 256
    $region45: #{tpu_custom_call.1} parent=1 // pred_fallthru
      _
    // Predicated region
    $region46: #{tpu_custom_call.1} parent=1 // pred_check
      _
    $region47: #{tpu_custom_call.1} parent=1 // pred_check_branch
      %144 = sbr.rel (0) target = $region49
    $region48: #{tpu_custom_call.1} parent=1 // pred_region
      %145 = dma.done [#allocation9], 256
    $region49: #{tpu_custom_call.1} parent=1 // pred_fallthru
      _
    // Predicated region
    $region50: #{tpu_custom_call.1} parent=1 // pred_check
      _
    $region51: #{tpu_custom_call.1} parent=1 // pred_check_branch
      %147 = sbr.rel (0) target = $region53
    $region52: #{tpu_custom_call.1} parent=1 // pred_region
      %148 = dma.done [#allocation12], 256
    $region53: #{tpu_custom_call.1} parent=1 // pred_fallthru
      _
    // Predicated region
    $region54: #{tpu_custom_call.1} parent=1 // pred_check
      _
    $region55: #{tpu_custom_call.1} parent=1 // pred_check_branch
      %150 = sbr.rel (0) target = $region57
    $region56: #{tpu_custom_call.1} parent=1 // pred_region
      %151 = dma.done [#allocation12], 256
    $region57: #{tpu_custom_call.1} parent=1 // pred_fallthru
      _
    %152 = vsyncpa [#allocation3], 1
    %153 = vsyncpa [#allocation6], 1
    %154 = vsyncpa [#allocation4], 1
    %155 = vsyncpa [#allocation9], 1
    %156 = vsyncpa [#allocation12], 1

</llo_original>
